<compile_context>
chip_gen: v7x
topology: tpu7x:2x2x1
jax: 0.10.0
libtpu: 0.0.40
codegen_flags: <defaults>
</compile_context>

<pallas_src>
import jax
import jax.numpy as jnp
from jax.experimental import pallas as pl
from jax.experimental.pallas import tpu as pltpu


def _prepostnet_kernel(x_ref, p_ref, o_ref):
    # x_ref: (N, Cin, HW) lane-dense block; normalization already folded into
    #        the packed parameters.
    # p_ref: (hidden+1, Cin+1+C) packed parameter slab:
    #        rows 0:hidden  -> [ w1^T (Cin) | b1 (1) | w2/HW (C) ]
    #        row  hidden    -> [    0       |   0    |   b2  (C) ]
    x = x_ref[...]                                     # (N, Cin, HW) f32
    p = p_ref[...]                                     # (hidden+1, Cin+1+C)

    n, cin, hw = x.shape
    hidden = p.shape[0] - 1
    c_out = o_ref.shape[-1]

    w1t = p[:hidden, :cin]                             # (hidden, Cin), norm folded
    b1 = p[:hidden, cin:cin + 1]                       # (hidden, 1),   norm folded
    w2 = p[:hidden, cin + 1:cin + 1 + c_out]           # (hidden, C),   1/HW folded
    b2 = p[hidden:hidden + 1, cin + 1:cin + 1 + c_out]  # (1, C)

    # --- 1x1 conv as VPU broadcast-FMAs (Cin == 3, static unroll; MXU would
    #     be badly under-filled at K=3) ---
    # h[n, o, pix] = b1[o] + sum_c w1t[o, c] * x[n, c, pix]
    h = w1t[:, 0:1][None, :, :] * x[:, 0:1, :]
    for c in range(1, cin):
        h = h + w1t[:, c:c + 1][None, :, :] * x[:, c:c + 1, :]
    h = jnp.maximum(h + b1[None, :, :], 0.0)           # (N, hidden, HW)

    # --- global average pool: 1/HW is folded into w2, so just a lane reduce ---
    pooled = jnp.sum(h, axis=-1)                       # (N, hidden)

    # --- linear head on the (idle) MXU ---
    logits = jnp.dot(pooled, w2, preferred_element_type=jnp.float32) + b2  # (N, C)

    # --- softmax over last dim (exact reciprocal; approx would break 1e-5) ---
    m = jnp.max(logits, axis=-1, keepdims=True)
    e = jnp.exp(logits - m)
    o_ref[...] = e * pl.reciprocal(jnp.sum(e, axis=-1, keepdims=True), approx=False)


@jax.jit
def prepostnet_forward(x, mean, scale, w1, b1, w2, b2):
    """x: (N, H, W, Cin) float32 NHWC pixels.  Returns softmax probs (N, C)."""
    N, H, W, Cin = x.shape
    hidden = w1.shape[1]
    num_classes = w2.shape[1]
    HW = H * W

    # Fold normalization into the first layer (exact algebra):
    #   ((x - mean) / scale) @ w1 + b1 == x @ (w1/scale) + (b1 - (mean/scale) @ w1)
    mean_v = mean.reshape(Cin)
    scale_v = scale.reshape(Cin)
    w1_eff = w1 / scale_v[:, None]                                    # (Cin, hidden)
    b1_eff = b1.reshape(1, hidden) - (mean_v / scale_v).reshape(1, Cin) @ w1
    w1t = jnp.transpose(w1_eff)                                       # (hidden, Cin)
    b1_col = b1_eff.reshape(hidden, 1)                                # (hidden, 1)

    # Fold the 1/HW of the average pool into the head weights.
    w2_eff = w2 / jnp.float32(HW)                                     # (hidden, C)
    b2_row = b2.reshape(1, num_classes)                               # (1, C)

    # Pack all parameters into ONE slab -> a single input DMA.
    top = jnp.concatenate([w1t, b1_col, w2_eff], axis=1)              # (hidden, Cin+1+C)
    bottom = jnp.concatenate(
        [jnp.zeros((1, Cin + 1), jnp.float32), b2_row], axis=1)       # (1, Cin+1+C)
    params = jnp.concatenate([top, bottom], axis=0)                   # (hidden+1, Cin+1+C)

    # Lane-dense layout: long spatial axis on lanes -> (N, Cin, H*W).
    # (Kept inside this jit so the transpose is not a separate XLA dispatch.)
    x_t = jnp.transpose(x.reshape(N, HW, Cin), (0, 2, 1))

    out = pl.pallas_call(
        _prepostnet_kernel,
        out_shape=jax.ShapeDtypeStruct((N, num_classes), jnp.float32),
        grid=(1,),                                                    # single fat step
        in_specs=[
            pl.BlockSpec((N, Cin, HW), lambda i: (0, 0, 0)),          # whole batch
            pl.BlockSpec((hidden + 1, Cin + 1 + num_classes),
                         lambda i: (0, 0)),                           # packed params
        ],
        out_specs=pl.BlockSpec((N, num_classes), lambda i: (0, 0)),
        compiler_params=pltpu.CompilerParams(
            dimension_semantics=("arbitrary",)),
    )(x_t, params)
    return out


def reference_forward(x, mean, scale, w1, b1, w2, b2):
    """Plain-JAX reference mirroring the PyTorch semantics (un-fused)."""
    xn = (x - mean.reshape(1, 1, 1, -1)) / scale.reshape(1, 1, 1, -1)
    N, H, W, Cin = xn.shape
    h = jnp.maximum(xn.reshape(N, H * W, Cin) @ w1 + b1, 0.0)
    pooled = jnp.mean(h, axis=1)                      # (N, hidden)
    logits = pooled @ w2 + b2                         # (N, num_classes)
    return jax.nn.softmax(logits, axis=-1)


if __name__ == "__main__":
    # Small shapes: batch=2, spatial=16x16, 3 input channels (frames=1),
    # hidden=8, num_classes=32.
    N, H, W = 2, 16, 16
    input_frame_number = 1
    Cin = 3 * input_frame_number
    hidden = 8
    num_classes = 32

    key = jax.random.PRNGKey(0)
    kx, kw1, kb1, kw2, kb2 = jax.random.split(key, 5)

    # Image-range input, like pixel values.
    x = jax.random.uniform(kx, (N, H, W, Cin), jnp.float32, 0.0, 255.0)

    # Constants from the module __init__ (tiled input_frame_number times).
    mean = jnp.asarray([123.675, 116.28, 103.53] * input_frame_number,
                       jnp.float32).reshape(1, Cin)
    scale = jnp.asarray([58.395, 57.12, 57.375] * input_frame_number,
                        jnp.float32).reshape(1, Cin)

    # Deterministic synthetic `net` parameters.
    # TODO(synk): the PyTorch module takes an arbitrary injected `net`; only this
    # synthetic conv1x1 -> ReLU -> global-avg-pool -> linear head is translated.
    w1 = jax.random.normal(kw1, (Cin, hidden), jnp.float32) * 0.1
    b1 = jax.random.normal(kb1, (1, hidden), jnp.float32) * 0.01
    w2 = jax.random.normal(kw2, (hidden, num_classes), jnp.float32) * 0.1
    b2 = jax.random.normal(kb2, (1, num_classes), jnp.float32) * 0.01

    out = prepostnet_forward(x, mean, scale, w1, b1, w2, b2)
    out = jax.block_until_ready(out)

    ref = reference_forward(x, mean, scale, w1, b1, w2, b2)
    assert out.shape == (N, num_classes)
    assert jnp.allclose(jnp.sum(out, axis=-1), 1.0, atol=1e-5)
    # Tolerance leaves headroom for MXU default-precision head matmul paths
    # differing slightly between the Pallas kernel and the XLA reference.
    assert jnp.allclose(out, ref, atol=1e-4, rtol=1e-4)

    print("KERNEL_OK")
</pallas_src>

<mosaic_0001>
module attributes {stable_mosaic.version = 11 : i64} {
  func.func @_prepostnet_kernel(%arg0: i32, %arg1: memref<2x3x256xf32, #tpu.memory_space<vmem>>, %arg2: memref<9x36xf32, #tpu.memory_space<vmem>>, %arg3: memref<2x32xf32, #tpu.memory_space<vmem>>) attributes {dimension_semantics = [#tpu.dimension_semantics<arbitrary>], iteration_bounds = array<i64: 1>, scalar_prefetch = 0 : i64, scratch_operands = 0 : i64, tpu.core_type = #tpu.core_type<tc>, window_params = [{pipeline_mode = #tpu.pipeline_mode<synchronous>, transform_indices = @transform_0, window_bounds = array<i64: 2, 3, 256>}, {pipeline_mode = #tpu.pipeline_mode<synchronous>, transform_indices = @transform_1, window_bounds = array<i64: 9, 36>}, {pipeline_mode = #tpu.pipeline_mode<synchronous>, transform_indices = @transform_2, window_bounds = array<i64: 2, 32>}]} {
    %c0 = arith.constant 0 : index
    %c0_0 = arith.constant 0 : index
    %c0_1 = arith.constant 0 : index
    %0 = vector.load %arg1[%c0, %c0_0, %c0_1] : memref<2x3x256xf32, #tpu.memory_space<vmem>>, vector<2x3x256xf32>
    %c0_2 = arith.constant 0 : index
    %c0_3 = arith.constant 0 : index
    %1 = vector.load %arg2[%c0_2, %c0_3] : memref<9x36xf32, #tpu.memory_space<vmem>>, vector<9x36xf32>
    %2 = vector.extract_strided_slice %1 {offsets = [0, 0], sizes = [8, 3], strides = [1, 1]} : vector<9x36xf32> to vector<8x3xf32>
    %3 = vector.extract_strided_slice %1 {offsets = [0, 3], sizes = [8, 1], strides = [1, 1]} : vector<9x36xf32> to vector<8x1xf32>
    %4 = vector.extract_strided_slice %1 {offsets = [0, 4], sizes = [8, 32], strides = [1, 1]} : vector<9x36xf32> to vector<8x32xf32>
    %5 = vector.extract_strided_slice %1 {offsets = [8, 4], sizes = [1, 32], strides = [1, 1]} : vector<9x36xf32> to vector<1x32xf32>
    %6 = vector.extract_strided_slice %2 {offsets = [0, 0], sizes = [8, 1], strides = [1, 1]} : vector<8x3xf32> to vector<8x1xf32>
    %7 = vector.shape_cast %6 : vector<8x1xf32> to vector<1x8x1xf32>
    %8 = vector.extract_strided_slice %0 {offsets = [0, 0, 0], sizes = [2, 1, 256], strides = [1, 1, 1]} : vector<2x3x256xf32> to vector<2x1x256xf32>
    %9 = vector.broadcast %7 : vector<1x8x1xf32> to vector<2x8x256xf32>
    %10 = vector.broadcast %8 : vector<2x1x256xf32> to vector<2x8x256xf32>
    %11 = arith.mulf %9, %10 : vector<2x8x256xf32>
    %12 = vector.extract_strided_slice %2 {offsets = [0, 1], sizes = [8, 1], strides = [1, 1]} : vector<8x3xf32> to vector<8x1xf32>
    %13 = vector.shape_cast %12 : vector<8x1xf32> to vector<1x8x1xf32>
    %14 = vector.extract_strided_slice %0 {offsets = [0, 1, 0], sizes = [2, 1, 256], strides = [1, 1, 1]} : vector<2x3x256xf32> to vector<2x1x256xf32>
    %15 = vector.broadcast %13 : vector<1x8x1xf32> to vector<2x8x256xf32>
    %16 = vector.broadcast %14 : vector<2x1x256xf32> to vector<2x8x256xf32>
    %17 = arith.mulf %15, %16 : vector<2x8x256xf32>
    %18 = arith.addf %11, %17 : vector<2x8x256xf32>
    %19 = vector.extract_strided_slice %2 {offsets = [0, 2], sizes = [8, 1], strides = [1, 1]} : vector<8x3xf32> to vector<8x1xf32>
    %20 = vector.shape_cast %19 : vector<8x1xf32> to vector<1x8x1xf32>
    %21 = vector.extract_strided_slice %0 {offsets = [0, 2, 0], sizes = [2, 1, 256], strides = [1, 1, 1]} : vector<2x3x256xf32> to vector<2x1x256xf32>
    %22 = vector.broadcast %20 : vector<1x8x1xf32> to vector<2x8x256xf32>
    %23 = vector.broadcast %21 : vector<2x1x256xf32> to vector<2x8x256xf32>
    %24 = arith.mulf %22, %23 : vector<2x8x256xf32>
    %25 = arith.addf %18, %24 : vector<2x8x256xf32>
    %26 = vector.shape_cast %3 : vector<8x1xf32> to vector<1x8x1xf32>
    %27 = vector.broadcast %26 : vector<1x8x1xf32> to vector<2x8x256xf32>
    %28 = arith.addf %25, %27 : vector<2x8x256xf32>
    %cst = arith.constant 0.000000e+00 : f32
    %29 = vector.broadcast %cst : f32 to vector<2x8x256xf32>
    %30 = arith.maximumf %28, %29 : vector<2x8x256xf32>
    %cst_4 = arith.constant dense<0.000000e+00> : vector<2x8xf32>
    %31 = vector.multi_reduction <add>, %30, %cst_4 [2] : vector<2x8x256xf32> to vector<2x8xf32>
    %cst_5 = arith.constant dense<0.000000e+00> : vector<2x32xf32>
    %32 = tpu.matmul %31, %4, %cst_5 {dimension_numbers = #tpu.dot_dimension_numbers<[1], [0], [0], [1], [0, 0, 1, 1], [], []>} : vector<2x8xf32>, vector<8x32xf32>, vector<2x32xf32> -> vector<2x32xf32>
    %33 = vector.broadcast %5 : vector<1x32xf32> to vector<2x32xf32>
    %34 = arith.addf %32, %33 : vector<2x32xf32>
    %cst_6 = arith.constant dense<0xFF800000> : vector<2xf32>
    %35 = vector.multi_reduction <maximumf>, %34, %cst_6 [1] : vector<2x32xf32> to vector<2xf32>
    %36 = vector.shape_cast %35 : vector<2xf32> to vector<2x1xf32>
    %37 = vector.broadcast %36 : vector<2x1xf32> to vector<2x32xf32>
    %38 = arith.subf %34, %37 : vector<2x32xf32>
    %39 = math.exp %38 : vector<2x32xf32>
    %cst_7 = arith.constant dense<0.000000e+00> : vector<2xf32>
    %40 = vector.multi_reduction <add>, %39, %cst_7 [1] : vector<2x32xf32> to vector<2xf32>
    %41 = vector.shape_cast %40 : vector<2xf32> to vector<2x1xf32>
    %42 = tpu.reciprocal %41 : vector<2x1xf32> -> vector<2x1xf32>
    %43 = vector.broadcast %42 : vector<2x1xf32> to vector<2x32xf32>
    %44 = arith.mulf %39, %43 : vector<2x32xf32>
    %c0_8 = arith.constant 0 : index
    %c0_9 = arith.constant 0 : index
    %45 = vector.load %arg3[%c0_8, %c0_9] : memref<2x32xf32, #tpu.memory_space<vmem>>, vector<2x32xf32>
    tpu.vector_store %arg3[%c0_8, %c0_9], %44 {strides = array<i32>} : memref<2x32xf32, #tpu.memory_space<vmem>>, vector<2x32xf32>,
    return
  }
  func.func @transform_0(%arg0: i32) -> (i32, i32, i32) {
    %c0_i32 = arith.constant 0 : i32
    %c0_i32_0 = arith.constant 0 : i32
    %c0_i32_1 = arith.constant 0 : i32
    %c0_i32_2 = arith.constant 0 : i32
    return %c0_i32, %c0_i32_0, %c0_i32_1 : i32, i32, i32
  }
  func.func @transform_1(%arg0: i32) -> (i32, i32) {
    %c0_i32 = arith.constant 0 : i32
    %c0_i32_0 = arith.constant 0 : i32
    %c0_i32_1 = arith.constant 0 : i32
    return %c0_i32, %c0_i32_0 : i32, i32
  }
  func.func @transform_2(%arg0: i32) -> (i32, i32) {
    %c0_i32 = arith.constant 0 : i32
    %c0_i32_0 = arith.constant 0 : i32
    %c0_i32_1 = arith.constant 0 : i32
    return %c0_i32, %c0_i32_0 : i32, i32
  }
}

</mosaic_0001>

<llo_original>
// kernel: prepostnet_forward.1
$region0: #{prepostnet_forward.1}
  #allocation0 [shape = 'u32[]', space=smem, size = 0x4, offset = 0x4, fixed_abs, tag = 'smem constant byte address 0x4 - core index']
  #allocation1 [shape = 'u32[144,128]{1,0:T(1,128)}', space=vmem, size = 0x12000, scoped, tag = 'internal scratch']
  %s0 = inlined_call_operand.vmem [shape: f32[2,3,256], index: 0, kind: input, shape index: {}]
  %s1 = inlined_call_operand.vmem [shape: f32[9,36], index: 1, kind: input, shape index: {}]
  %s2 = inlined_call_operand.hbm [shape: f32[2,32], index: 2, kind: output, shape index: {}]
  %s3 = sld [smem:[#allocation0]]
  $region18: #{prepostnet_forward.1} parent=0
    _
  %s5 = ssub.s32 1, %s3
  %s6 = scalar_select 0, %s5, %s3
  $region1: #{prepostnet_forward.1} parent=0
    #allocation2 [shape = 'u8[1024]{0}', space=vmem, size = 0x400, scoped, tag = 'output window, operand 0, single buffered']
    #allocation3 [shape = 's32[1]{0}', space=sflag, size = 0x4, scoped, tag = 'scoped memory for prepostnet_forward.1']
    %7 = vsyncpa [#allocation3], 0
    // Predicated region
    $region2: #{prepostnet_forward.1} parent=1 // pred_check
      _
    $region3: #{prepostnet_forward.1} parent=1 // pred_check_branch
      %9 = sbr.rel (0) target = $region5
    $region4: #{prepostnet_forward.1} parent=1 // pred_region
      _
    $region5: #{prepostnet_forward.1} parent=1 // pred_fallthru
      _
    // Predicated region
    $region6: #{prepostnet_forward.1} parent=1 // pred_check
      _
    $region7: #{prepostnet_forward.1} parent=1 // pred_check_branch
      %11 = sbr.rel (0) target = $region9
    $region8: #{prepostnet_forward.1} parent=1 // pred_region
      _
    $region9: #{prepostnet_forward.1} parent=1 // pred_fallthru
      _
    %v12 = vld [vmem:[%s0] sm:$0x77]
    %v13 = vld [vmem:[%s0 + $0x8] sm:$0x77]
    %v14 = vld [vmem:[%s1] sm:$0xff]
    %v15 = vld [vmem:[%s1 + $0x8] sm:$0x1]
    %17 = vset.pattern.permute.xlu0 0
    %18 = vperm.xlu0 %17, %v14
    %v19 = vpop.permute.xlu0 %18
    %v23 = vlaneseq
    %v24 = vshrl.u32 %v23, 7
    %v25 = vsub.s32 0, %v24
    %v26 = vrot.slane %v12, %v25
    %v27 = vlaneseq
    %v28 = vshrl.u32 %v27, 7
    %v29 = vsub.s32 4, %v28
    %v30 = vrot.slane %v12, %v29
    %v31 = vlaneseq
    %v32 = vshrl.u32 %v31, 7
    %v33 = vsub.s32 0, %v32
    %v34 = vrot.slane %v13, %v33
    %v35 = vlaneseq
    %v36 = vshrl.u32 %v35, 7
    %v37 = vsub.s32 4, %v36
    %v38 = vrot.slane %v13, %v37
    %v43 = vlaneseq
    %v44 = vshrl.u32 %v43, 7
    %v45 = vsub.s32 0, %v44
    %v46 = vrot.slane %v26, %v45
    %v47 = vlaneseq
    %v48 = vshrl.u32 %v47, 7
    %v49 = vsub.s32 0, %v48
    %v50 = vrot.slane %v30, %v49
    %v51 = vlaneseq
    %v52 = vshrl.u32 %v51, 7
    %v53 = vsub.s32 0, %v52
    %v54 = vrot.slane %v34, %v53
    %v55 = vlaneseq
    %v56 = vshrl.u32 %v55, 7
    %v57 = vsub.s32 0, %v56
    %v58 = vrot.slane %v38, %v57
    %v59 = vmul.f32 %v19, %v46
    %v60 = vmul.f32 %v19, %v50
    %v61 = vmul.f32 %v19, %v54
    %v62 = vmul.f32 %v19, %v58
    %63 = vset.pattern.permute.xlu0 1
    %64 = vperm.xlu0 %63, %v14
    %v65 = vpop.permute.xlu0 %64
    %v67 = vlaneseq
    %v68 = vshrl.u32 %v67, 7
    %v69 = vsub.s32 1, %v68
    %v70 = vrot.slane %v12, %v69
    %v71 = vlaneseq
    %v72 = vshrl.u32 %v71, 7
    %v73 = vsub.s32 5, %v72
    %v74 = vrot.slane %v12, %v73
    %v75 = vlaneseq
    %v76 = vshrl.u32 %v75, 7
    %v77 = vsub.s32 1, %v76
    %v78 = vrot.slane %v13, %v77
    %v79 = vlaneseq
    %v80 = vshrl.u32 %v79, 7
    %v81 = vsub.s32 5, %v80
    %v82 = vrot.slane %v13, %v81
    %v87 = vlaneseq
    %v88 = vshrl.u32 %v87, 7
    %v89 = vsub.s32 1, %v88
    %v90 = vrot.slane %v70, %v89
    %v91 = vlaneseq
    %v92 = vshrl.u32 %v91, 7
    %v93 = vsub.s32 1, %v92
    %v94 = vrot.slane %v74, %v93
    %v95 = vlaneseq
    %v96 = vshrl.u32 %v95, 7
    %v97 = vsub.s32 1, %v96
    %v98 = vrot.slane %v78, %v97
    %v99 = vlaneseq
    %v100 = vshrl.u32 %v99, 7
    %v101 = vsub.s32 1, %v100
    %v102 = vrot.slane %v82, %v101
    %v103 = vmul.f32 %v65, %v90
    %v104 = vmul.f32 %v65, %v94
    %v105 = vmul.f32 %v65, %v98
    %v106 = vmul.f32 %v65, %v102
    %v107 = vadd.f32 %v59, %v103
    %v108 = vadd.f32 %v60, %v104
    %v109 = vadd.f32 %v61, %v105
    %v110 = vadd.f32 %v62, %v106
    %111 = vset.pattern.permute.xlu0 2
    %112 = vperm.xlu0 %111, %v14
    %v113 = vpop.permute.xlu0 %112
    %v115 = vlaneseq
    %v116 = vshrl.u32 %v115, 7
    %v117 = vsub.s32 2, %v116
    %v118 = vrot.slane %v12, %v117
    %v119 = vlaneseq
    %v120 = vshrl.u32 %v119, 7
    %v121 = vsub.s32 6, %v120
    %v122 = vrot.slane %v12, %v121
    %v123 = vlaneseq
    %v124 = vshrl.u32 %v123, 7
    %v125 = vsub.s32 2, %v124
    %v126 = vrot.slane %v13, %v125
    %v127 = vlaneseq
    %v128 = vshrl.u32 %v127, 7
    %v129 = vsub.s32 6, %v128
    %v130 = vrot.slane %v13, %v129
    %v135 = vlaneseq
    %v136 = vshrl.u32 %v135, 7
    %v137 = vsub.s32 2, %v136
    %v138 = vrot.slane %v118, %v137
    %v139 = vlaneseq
    %v140 = vshrl.u32 %v139, 7
    %v141 = vsub.s32 2, %v140
    %v142 = vrot.slane %v122, %v141
    %v143 = vlaneseq
    %v144 = vshrl.u32 %v143, 7
    %v145 = vsub.s32 2, %v144
    %v146 = vrot.slane %v126, %v145
    %v147 = vlaneseq
    %v148 = vshrl.u32 %v147, 7
    %v149 = vsub.s32 2, %v148
    %v150 = vrot.slane %v130, %v149
    %v151 = vmul.f32 %v113, %v138
    %v152 = vmul.f32 %v113, %v142
    %v153 = vmul.f32 %v113, %v146
    %v154 = vmul.f32 %v113, %v150
    %v155 = vadd.f32 %v107, %v151
    %v156 = vadd.f32 %v108, %v152
    %v157 = vadd.f32 %v109, %v153
    %v158 = vadd.f32 %v110, %v154
    %159 = vset.pattern.permute.xlu0 3
    %160 = vperm.xlu0 %159, %v14
    %v161 = vpop.permute.xlu0 %160
    %v163 = vadd.f32 %v155, %v161
    %v164 = vadd.f32 %v156, %v161
    %v165 = vadd.f32 %v157, %v161
    %v166 = vadd.f32 %v158, %v161
    %v167 = vmax.f32 %v163, 0.0
    %v168 = vmax.f32 %v164, 0.0
    %v169 = vmax.f32 %v165, 0.0
    %v170 = vmax.f32 %v166, 0.0
    %v171 = vadd.f32 %v167, %v168
    %172 = vadd.xlane.f32.xlu0 %v171
    %v173 = vpop.xlane.xlu0 %172
    %v174 = vadd.f32 %v169, %v170
    %175 = vadd.xlane.f32.xlu0 %v174
    %v176 = vpop.xlane.xlu0 %175
    %v177 = vlaneseq
    %v178 = vshrl.u32 %v177, 7
    %v179 = vsub.s32 0, %v178
    %v180 = vrot.slane %v15, %v179
    %v183 = vlaneseq
    %v184 = vand.u32 %v183, 127
    %v185 = vlaneseq
    %v186 = vshrl.u32 %v185, 7
    %v187 = vsub.s32 %v184, %v186
    %v188 = vrot.slane %v173, %v187
    %v189 = vlaneseq
    %v190 = vshrl.u32 %v189, 7
    %v191 = vsub.s32 %v184, %v190
    %v192 = vrot.slane %v176, %v191
    %vm193 = vcmask 1041409
    %v194 = vsel %vm193, %v192, %v188
    %195 = vrot.lane.b32.xlu0 %v14, 124
    %v196 = vpop.permute.xlu0 %195
    %199 = vrot.lane.b32.xlu0 %v180, 124
    %v200 = vpop.permute.xlu0 %199
    %vm202 = vcmask 64512
    %v203 = vsel %vm202, %v194, 0
    %205 = vmatprep.subr.mxu0 0.0
    %206 = vmatpush1.msra.mxu0 %v196
    %207 = vmatprep.subr.mxu0 0.0
    %208 = vmatpush1.msra.mxu0 0.0
    %209 = vmatprep.subr.mxu0 0.0
    %210 = vmatpush1.msra.mxu0 0.0
    %211 = vmatprep.subr.mxu0 0.0
    %212 = vmatpush1.msra.mxu0 0.0
    %213 = vmatprep.subr.mxu0 0.0
    %214 = vmatpush1.msra.mxu0 0.0
    %215 = vmatprep.subr.mxu0 0.0
    %216 = vmatpush1.msra.mxu0 0.0
    %217 = vmatprep.subr.mxu0 0.0
    %218 = vmatpush1.msra.mxu0 0.0
    %219 = vmatprep.subr.mxu0 0.0
    %220 = vmatpush1.msra.mxu0 0.0
    %221 = vmatprep.subr.mxu0 0.0
    %222 = vmatpush1.msra.mxu0 0.0
    %223 = vmatprep.subr.mxu0 0.0
    %224 = vmatpush1.msra.mxu0 0.0
    %225 = vmatprep.subr.mxu0 0.0
    %226 = vmatpush1.msra.mxu0 0.0
    %227 = vmatprep.subr.mxu0 0.0
    %228 = vmatpush1.msra.mxu0 0.0
    %229 = vmatprep.subr.mxu0 0.0
    %230 = vmatpush1.msra.mxu0 0.0
    %231 = vmatprep.subr.mxu0 0.0
    %232 = vmatpush1.msra.mxu0 0.0
    %233 = vmatprep.subr.mxu0 0.0
    %234 = vmatpush1.msra.mxu0 0.0
    %235 = vmatprep.subr.mxu0 0.0
    %236 = vmatpush1.msra.mxu0 0.0
    %237 = vmatprep.subr.mxu0 0.0
    %238 = vmatpush1.msra.mxu0 0.0
    %239 = vmatprep.subr.mxu0 0.0
    %240 = vmatpush1.msra.mxu0 0.0
    %241 = vmatprep.subr.mxu0 0.0
    %242 = vmatpush1.msra.mxu0 0.0
    %243 = vmatprep.subr.mxu0 0.0
    %244 = vmatpush1.msra.mxu0 0.0
    %245 = vmatprep.subr.mxu0 0.0
    %246 = vmatpush1.msra.mxu0 0.0
    %247 = vmatprep.subr.mxu0 0.0
    %248 = vmatpush1.msra.mxu0 0.0
    %249 = vmatprep.subr.mxu0 0.0
    %250 = vmatpush1.msra.mxu0 0.0
    %251 = vmatprep.subr.mxu0 0.0
    %252 = vmatpush1.msra.mxu0 0.0
    %253 = vmatprep.subr.mxu0 0.0
    %254 = vmatpush1.msra.mxu0 0.0
    %255 = vmatprep.subr.mxu0 0.0
    %256 = vmatpush1.msra.mxu0 0.0
    %257 = vmatprep.subr.mxu0 0.0
    %258 = vmatpush1.msra.mxu0 0.0
    %259 = vmatprep.subr.mxu0 0.0
    %260 = vmatpush1.msra.mxu0 0.0
    %261 = vmatprep.subr.mxu0 0.0
    %262 = vmatpush1.msra.mxu0 0.0
    %263 = vmatprep.subr.mxu0 0.0
    %264 = vmatpush1.msra.mxu0 0.0
    %265 = vmatprep.subr.mxu0 0.0
    %266 = vmatpush1.msra.mxu0 0.0
    %267 = vmatprep.subr.mxu0 0.0
    %268 = vmatpush1.msra.mxu0 0.0
    %269 = vmatprep.mubr.f32.mxu0 0.0
    %270 = vmatmul.mubr.f32.gmra.mrb[0].mxu0 %v203
    %v271 = vpop.f32.mrb[0].mxu0
    %v272 = vadd.f32 %v200, %v271
    %v273 = vpop.f32.mrb[0].mxu0
    %274 = vdwg.mxu0
    %vm275 = vcmask 254976
    %v276 = vsel %vm275, %v272, -inf
    %277 = vmax.xlane.f32.xlu0 %v276
    %v278 = vpop.xlane.xlu0 %277
    %v279 = vsub.f32 %v272, %v278
    %v280 = vmul.f32 %v279, 1.442695
    %v281 = vpow.pop %v280
    %v282 = vsel %vm275, %v281, 0.0
    %283 = vadd.xlane.f32.xlu0 %v282
    %v284 = vpop.xlane.xlu0 %283
    %v285 = vrcp.pop %v284
    %v286 = vmul.f32 %v281, %v285
    %287 = vst.msk [vmem:[#allocation2] sm:$0x3] %vm275, %v286
    // Predicated region
    $region10: #{prepostnet_forward.1} parent=1 // pred_check
      _
    $region11: #{prepostnet_forward.1} parent=1 // pred_check_branch
      %289 = sbr.rel (0) target = $region13
    $region12: #{prepostnet_forward.1} parent=1 // pred_region
      %s291 = ssub.s32 32, 32
      %292 = vsyncadd [#allocation3], %s291
      %s294 = sshll.u32 [#allocation2], 4
      %s295 = int_to_ptr.vmem [resolvable:$true] %s294
      %297 = dma.vmem_to_hbm [thread:$0]  %s295, 32, %s2, [#allocation3]
    $region13: #{prepostnet_forward.1} parent=1 // pred_fallthru
      _
    // Predicated region
    $region14: #{prepostnet_forward.1} parent=1 // pred_check
      _
    $region15: #{prepostnet_forward.1} parent=1 // pred_check_branch
      %299 = sbr.rel (0) target = $region17
    $region16: #{prepostnet_forward.1} parent=1 // pred_region
      %300 = dma.done [#allocation3], 32
    $region17: #{prepostnet_forward.1} parent=1 // pred_fallthru
      _
    %301 = vsyncpa [#allocation3], 1

</llo_original>
